<compile_context>
chip_gen: v6e
topology: v6e:2x2x1
jax: 0.10.0
libtpu: 0.0.40
codegen_flags: <defaults>
</compile_context>

<pallas_src>
import jax
import jax.numpy as jnp
from jax.experimental import pallas as pl
from jax.experimental.pallas import tpu as pltpu

NEG_SLOPE = 0.01164564
BN_EPS = 1e-5


def _make_kernel(n_valid, lp, n_pad):
    """Kernel closure for static (valid element count, padded L, pad count)."""
    inv_n = 1.0 / float(n_valid)
    pad_cnt = float(n_pad)

    def kernel(p_ref, x_ref, o_ref):
        # p_ref: SMEM (17,) f32 -> [w1_0..2, g1, be1, w2_0..3, g2_0..3, be2_0..3]
        # x_ref: VMEM (N, 3*lp) f32  row-major view of NCW input (zero-padded L)
        # o_ref: VMEM (N, 4*lp) f32  row-major view of NCW output

        # ---- hoisted scalar parameter reads (SMEM) ----
        w1_0 = p_ref[0]
        w1_1 = p_ref[1]
        w1_2 = p_ref[2]
        g1 = p_ref[3]
        be1 = p_ref[4]

        # ---- conv1 (k=1): pure VPU FMAs on lane-aligned channel slices.
        #      conv1 bias cancels in BN1 and is never applied. ----
        x0 = x_ref[:, 0 * lp:1 * lp]
        x1 = x_ref[:, 1 * lp:2 * lp]
        x2 = x_ref[:, 2 * lp:3 * lp]
        u1 = w1_0 * x0 + w1_1 * x1 + w1_2 * x2            # (N, lp)

        # ---- BN1 batch stats (no mask: padded tail of u1 is exactly 0). ----
        s1 = jnp.sum(u1)
        q1 = jnp.sum(u1 * u1)
        mean1 = s1 * inv_n
        var1 = jnp.maximum(q1 * inv_n - mean1 * mean1, 0.0)
        a1 = g1 * jax.lax.rsqrt(var1 + BN_EPS)             # gamma1 * rstd1
        c1 = be1 - a1 * mean1                               # beta1 - a1*mean1

        # ---- BN1 affine + LeakyReLU exactly as in the reference. ----
        v2 = u1 * a1 + c1
        v5 = jnp.where(v2 > 0, v2, v2 * NEG_SLOPE)          # (N, lp)

        # ---- single reduction over the bottleneck stream v5 (conv2+BN2 are
        #      collapsed).  Padded tail holds the constant leaky(c1); remove
        #      its contribution with two scalar ops instead of a mask. ----
        s5 = jnp.sum(v5)
        q5 = jnp.sum(v5 * v5)
        if n_pad:
            t = jnp.where(c1 > 0, c1, c1 * NEG_SLOPE)
            s5 = s5 - pad_cnt * t
            q5 = q5 - pad_cnt * (t * t)
        mean5 = s5 * inv_n
        var5 = jnp.maximum(q5 * inv_n - mean5 * mean5, 0.0)

        # ---- conv2 + BN2 collapsed: 4 scalar affines, all computed before
        #      the big-array apply loop. ----
        affines = []
        for c in range(4):
            w2c = p_ref[5 + c]
            g2c = p_ref[9 + c]
            be2c = p_ref[13 + c]
            scale = g2c * w2c * jax.lax.rsqrt(w2c * w2c * var5 + BN_EPS)
            shift = be2c - scale * mean5
            affines.append((scale, shift))

        # ---- apply + store: lane-aligned 128-dense stores into the row-major
        #      NCW output view; FMA and store interleaved per channel. ----
        for c in range(4):
            scale, shift = affines[c]
            o_ref[:, c * lp:(c + 1) * lp] = v5 * scale + shift

    return kernel


def model_forward(x, params):
    """x: (N, 3, L) float32 (PyTorch NCW) -> (N, 4, L) float32."""
    N, Cin, L = x.shape
    assert Cin == 3
    Lp = ((L + 127) // 128) * 128          # lane-align the spatial axis
    pad = Lp - L
    if pad:
        # Zero padding keeps conv1 output exactly 0 in the tail (bias dropped),
        # which the kernel relies on for unmasked BN1 statistics.
        x = jnp.pad(x, ((0, 0), (0, 0), (0, pad)))

    # Free reshapes: (N, 3, Lp) / (N, 4, Lp) are row-major contiguous, so the
    # kernel reads/writes the NCW buffers directly (no transposes, no extra
    # HBM passes, no trailing channel-major slice).
    x2d = x.reshape(N, 3 * Lp)

    # Scalar parameters packed into one SMEM vector; conv biases cancel in the
    # training-mode batch norms and are never transferred.
    p = jnp.concatenate([
        params["w1"].reshape(3),
        params["g1"].reshape(1),
        params["be1"].reshape(1),
        params["w2"].reshape(4),
        params["g2"].reshape(4),
        params["be2"].reshape(4),
    ]).astype(jnp.float32)

    # Only raise the scoped-VMEM limit when the resident footprint requires it,
    # and never to the full 64 MiB of a v7x core (keep compiler headroom).
    n8 = ((N + 7) // 8) * 8
    est_bytes = 4 * n8 * Lp * (3 + 4 + 2)   # input + output + u1/v5 temporaries
    if est_bytes > 24 * 1024 * 1024:
        compiler_params = pltpu.CompilerParams(
            vmem_limit_bytes=int(min(2 * est_bytes, 48 * 1024 * 1024)))
    else:
        compiler_params = None

    out2d = pl.pallas_call(
        _make_kernel(N * L, Lp, N * pad),
        out_shape=jax.ShapeDtypeStruct((N, 4 * Lp), jnp.float32),
        in_specs=[
            pl.BlockSpec(memory_space=pltpu.MemorySpace.SMEM),
            pl.BlockSpec(memory_space=pltpu.MemorySpace.VMEM),
        ],
        out_specs=pl.BlockSpec(memory_space=pltpu.MemorySpace.VMEM),
        compiler_params=compiler_params,
    )(p, x2d)

    out = out2d.reshape(N, 4, Lp)
    if pad:
        out = out[:, :, :L]
    return out


def _reference_forward(x, params):
    """Pure-JAX reference with the original PyTorch training-mode semantics."""
    v1 = jnp.einsum("ncl,oc->nol", x, params["w1"]) + params["b1"].reshape(1, 1, 1)
    m1 = jnp.mean(v1, axis=(0, 2), keepdims=True)
    var1 = jnp.mean((v1 - m1) ** 2, axis=(0, 2), keepdims=True)
    v2 = (v1 - m1) * jax.lax.rsqrt(var1 + BN_EPS) * params["g1"].reshape(1, 1, 1) \
        + params["be1"].reshape(1, 1, 1)
    v5 = jnp.where(v2 > 0, v2, v2 * NEG_SLOPE)
    v6 = jnp.einsum("ncl,oc->nol", v5, params["w2"]) + params["b2"].reshape(1, 4, 1)
    m2 = jnp.mean(v6, axis=(0, 2), keepdims=True)
    var2 = jnp.mean((v6 - m2) ** 2, axis=(0, 2), keepdims=True)
    return (v6 - m2) * jax.lax.rsqrt(var2 + BN_EPS) * params["g2"].reshape(1, 4, 1) \
        + params["be2"].reshape(1, 4, 1)


def init_params(key):
    k = jax.random.split(key, 8)
    return {
        # Conv1d(3, 1, 1): weight (1, 3, 1) squeezed to (1, 3), bias (1,)
        "w1": jax.random.normal(k[0], (1, 3), jnp.float32) * 0.5,
        "b1": jax.random.normal(k[1], (1,), jnp.float32) * 0.1,
        # BatchNorm1d(1): gamma, beta
        "g1": jnp.ones((1,), jnp.float32) + 0.1 * jax.random.normal(k[2], (1,), jnp.float32),
        "be1": 0.1 * jax.random.normal(k[3], (1,), jnp.float32),
        # Conv1d(1, 4, 1): weight (4, 1, 1) squeezed to (4, 1), bias (4,)
        "w2": jax.random.normal(k[4], (4, 1), jnp.float32) * 0.5,
        "b2": jax.random.normal(k[5], (4,), jnp.float32) * 0.1,
        # BatchNorm1d(4): gamma, beta
        "g2": jnp.ones((4,), jnp.float32) + 0.1 * jax.random.normal(k[6], (4,), jnp.float32),
        "be2": 0.1 * jax.random.normal(k[7], (4,), jnp.float32),
    }


if __name__ == "__main__":
    key = jax.random.PRNGKey(0)
    pkey, xkey = jax.random.split(key)
    params = init_params(pkey)

    # Small NCW input; L is a multiple of 128 so the pad-free, transpose-free
    # fast path is exercised.
    x = jax.random.normal(xkey, (2, 3, 512), jnp.float32)

    out = model_forward(x, params)
    jax.block_until_ready(out)
    assert out.shape == (2, 4, 512), out.shape

    ref = _reference_forward(x, params)
    max_err = float(jnp.max(jnp.abs(out - ref)))
    assert jnp.allclose(out, ref, atol=1e-3, rtol=1e-3), max_err

    print("KERNEL_OK")
</pallas_src>

<mosaic_0001>
module attributes {stable_mosaic.version = 11 : i64} {
  func.func @kernel(%arg0: memref<17xf32, #tpu.memory_space<smem>>, %arg1: memref<2x1536xf32, #tpu.memory_space<vmem>>, %arg2: memref<2x2048xf32, #tpu.memory_space<vmem>>) attributes {dimension_semantics = [], scalar_prefetch = 0 : i64, scratch_operands = 0 : i64, tpu.core_type = #tpu.core_type<tc>} {
    %c0 = arith.constant 0 : index
    %0 = memref.load %arg0[%c0] : memref<17xf32, #tpu.memory_space<smem>>
    %c1 = arith.constant 1 : index
    %1 = memref.load %arg0[%c1] : memref<17xf32, #tpu.memory_space<smem>>
    %c2 = arith.constant 2 : index
    %2 = memref.load %arg0[%c2] : memref<17xf32, #tpu.memory_space<smem>>
    %c3 = arith.constant 3 : index
    %3 = memref.load %arg0[%c3] : memref<17xf32, #tpu.memory_space<smem>>
    %c4 = arith.constant 4 : index
    %4 = memref.load %arg0[%c4] : memref<17xf32, #tpu.memory_space<smem>>
    %c0_0 = arith.constant 0 : index
    %c0_1 = arith.constant 0 : index
    %5 = vector.load %arg1[%c0_0, %c0_1] : memref<2x1536xf32, #tpu.memory_space<vmem>>, vector<2x512xf32>
    %c0_2 = arith.constant 0 : index
    %c512 = arith.constant 512 : index
    %6 = vector.load %arg1[%c0_2, %c512] : memref<2x1536xf32, #tpu.memory_space<vmem>>, vector<2x512xf32>
    %c0_3 = arith.constant 0 : index
    %c1024 = arith.constant 1024 : index
    %7 = vector.load %arg1[%c0_3, %c1024] : memref<2x1536xf32, #tpu.memory_space<vmem>>, vector<2x512xf32>
    %8 = vector.broadcast %0 : f32 to vector<2x512xf32>
    %9 = arith.mulf %8, %5 : vector<2x512xf32>
    %10 = vector.broadcast %1 : f32 to vector<2x512xf32>
    %11 = arith.mulf %10, %6 : vector<2x512xf32>
    %12 = arith.addf %9, %11 : vector<2x512xf32>
    %13 = vector.broadcast %2 : f32 to vector<2x512xf32>
    %14 = arith.mulf %13, %7 : vector<2x512xf32>
    %15 = arith.addf %12, %14 : vector<2x512xf32>
    %16 = vector.shape_cast %15 : vector<2x512xf32> to vector<1x2x512xf32>
    %cst = arith.constant dense<0.000000e+00> : vector<1xf32>
    %17 = vector.multi_reduction <add>, %16, %cst [1, 2] : vector<1x2x512xf32> to vector<1xf32>
    %18 = vector.shape_cast %17 : vector<1xf32> to vector<1x1x1xf32>
    %19 = vector.extract %18[0, 0, 0] : f32 from vector<1x1x1xf32>
    %20 = arith.mulf %15, %15 : vector<2x512xf32>
    %21 = vector.shape_cast %20 : vector<2x512xf32> to vector<1x2x512xf32>
    %cst_4 = arith.constant dense<0.000000e+00> : vector<1xf32>
    %22 = vector.multi_reduction <add>, %21, %cst_4 [1, 2] : vector<1x2x512xf32> to vector<1xf32>
    %23 = vector.shape_cast %22 : vector<1xf32> to vector<1x1x1xf32>
    %24 = vector.extract %23[0, 0, 0] : f32 from vector<1x1x1xf32>
    %cst_5 = arith.constant 9.765625E-4 : f32
    %25 = arith.mulf %19, %cst_5 : f32
    %cst_6 = arith.constant 9.765625E-4 : f32
    %26 = arith.mulf %24, %cst_6 : f32
    %27 = arith.mulf %25, %25 : f32
    %28 = arith.subf %26, %27 : f32
    %cst_7 = arith.constant 0.000000e+00 : f32
    %29 = arith.maximumf %28, %cst_7 : f32
    %cst_8 = arith.constant 9.99999974E-6 : f32
    %30 = arith.addf %29, %cst_8 : f32
    %31 = math.rsqrt %30 : f32
    %32 = arith.mulf %3, %31 : f32
    %33 = arith.mulf %32, %25 : f32
    %34 = arith.subf %4, %33 : f32
    %35 = vector.broadcast %32 : f32 to vector<2x512xf32>
    %36 = arith.mulf %15, %35 : vector<2x512xf32>
    %37 = vector.broadcast %34 : f32 to vector<2x512xf32>
    %38 = arith.addf %36, %37 : vector<2x512xf32>
    %cst_9 = arith.constant 0.000000e+00 : f32
    %39 = vector.broadcast %cst_9 : f32 to vector<2x512xf32>
    %40 = arith.cmpf ogt, %38, %39 : vector<2x512xf32>
    %cst_10 = arith.constant 0.0116456402 : f32
    %41 = vector.broadcast %cst_10 : f32 to vector<2x512xf32>
    %42 = arith.mulf %38, %41 : vector<2x512xf32>
    %43 = arith.select %40, %38, %42 : vector<2x512xi1>, vector<2x512xf32>
    %44 = vector.shape_cast %43 : vector<2x512xf32> to vector<1x2x512xf32>
    %cst_11 = arith.constant dense<0.000000e+00> : vector<1xf32>
    %45 = vector.multi_reduction <add>, %44, %cst_11 [1, 2] : vector<1x2x512xf32> to vector<1xf32>
    %46 = vector.shape_cast %45 : vector<1xf32> to vector<1x1x1xf32>
    %47 = vector.extract %46[0, 0, 0] : f32 from vector<1x1x1xf32>
    %48 = arith.mulf %43, %43 : vector<2x512xf32>
    %49 = vector.shape_cast %48 : vector<2x512xf32> to vector<1x2x512xf32>
    %cst_12 = arith.constant dense<0.000000e+00> : vector<1xf32>
    %50 = vector.multi_reduction <add>, %49, %cst_12 [1, 2] : vector<1x2x512xf32> to vector<1xf32>
    %51 = vector.shape_cast %50 : vector<1xf32> to vector<1x1x1xf32>
    %52 = vector.extract %51[0, 0, 0] : f32 from vector<1x1x1xf32>
    %cst_13 = arith.constant 9.765625E-4 : f32
    %53 = arith.mulf %47, %cst_13 : f32
    %cst_14 = arith.constant 9.765625E-4 : f32
    %54 = arith.mulf %52, %cst_14 : f32
    %55 = arith.mulf %53, %53 : f32
    %56 = arith.subf %54, %55 : f32
    %cst_15 = arith.constant 0.000000e+00 : f32
    %57 = arith.maximumf %56, %cst_15 : f32
    %c5 = arith.constant 5 : index
    %58 = memref.load %arg0[%c5] : memref<17xf32, #tpu.memory_space<smem>>
    %c9 = arith.constant 9 : index
    %59 = memref.load %arg0[%c9] : memref<17xf32, #tpu.memory_space<smem>>
    %c13 = arith.constant 13 : index
    %60 = memref.load %arg0[%c13] : memref<17xf32, #tpu.memory_space<smem>>
    %61 = arith.mulf %59, %58 : f32
    %62 = arith.mulf %58, %58 : f32
    %63 = arith.mulf %62, %57 : f32
    %cst_16 = arith.constant 9.99999974E-6 : f32
    %64 = arith.addf %63, %cst_16 : f32
    %65 = math.rsqrt %64 : f32
    %66 = arith.mulf %61, %65 : f32
    %67 = arith.mulf %66, %53 : f32
    %68 = arith.subf %60, %67 : f32
    %c6 = arith.constant 6 : index
    %69 = memref.load %arg0[%c6] : memref<17xf32, #tpu.memory_space<smem>>
    %c10 = arith.constant 10 : index
    %70 = memref.load %arg0[%c10] : memref<17xf32, #tpu.memory_space<smem>>
    %c14 = arith.constant 14 : index
    %71 = memref.load %arg0[%c14] : memref<17xf32, #tpu.memory_space<smem>>
    %72 = arith.mulf %70, %69 : f32
    %73 = arith.mulf %69, %69 : f32
    %74 = arith.mulf %73, %57 : f32
    %cst_17 = arith.constant 9.99999974E-6 : f32
    %75 = arith.addf %74, %cst_17 : f32
    %76 = math.rsqrt %75 : f32
    %77 = arith.mulf %72, %76 : f32
    %78 = arith.mulf %77, %53 : f32
    %79 = arith.subf %71, %78 : f32
    %c7 = arith.constant 7 : index
    %80 = memref.load %arg0[%c7] : memref<17xf32, #tpu.memory_space<smem>>
    %c11 = arith.constant 11 : index
    %81 = memref.load %arg0[%c11] : memref<17xf32, #tpu.memory_space<smem>>
    %c15 = arith.constant 15 : index
    %82 = memref.load %arg0[%c15] : memref<17xf32, #tpu.memory_space<smem>>
    %83 = arith.mulf %81, %80 : f32
    %84 = arith.mulf %80, %80 : f32
    %85 = arith.mulf %84, %57 : f32
    %cst_18 = arith.constant 9.99999974E-6 : f32
    %86 = arith.addf %85, %cst_18 : f32
    %87 = math.rsqrt %86 : f32
    %88 = arith.mulf %83, %87 : f32
    %89 = arith.mulf %88, %53 : f32
    %90 = arith.subf %82, %89 : f32
    %c8 = arith.constant 8 : index
    %91 = memref.load %arg0[%c8] : memref<17xf32, #tpu.memory_space<smem>>
    %c12 = arith.constant 12 : index
    %92 = memref.load %arg0[%c12] : memref<17xf32, #tpu.memory_space<smem>>
    %c16 = arith.constant 16 : index
    %93 = memref.load %arg0[%c16] : memref<17xf32, #tpu.memory_space<smem>>
    %94 = arith.mulf %92, %91 : f32
    %95 = arith.mulf %91, %91 : f32
    %96 = arith.mulf %95, %57 : f32
    %cst_19 = arith.constant 9.99999974E-6 : f32
    %97 = arith.addf %96, %cst_19 : f32
    %98 = math.rsqrt %97 : f32
    %99 = arith.mulf %94, %98 : f32
    %100 = arith.mulf %99, %53 : f32
    %101 = arith.subf %93, %100 : f32
    %102 = vector.broadcast %66 : f32 to vector<2x512xf32>
    %103 = arith.mulf %43, %102 : vector<2x512xf32>
    %104 = vector.broadcast %68 : f32 to vector<2x512xf32>
    %105 = arith.addf %103, %104 : vector<2x512xf32>
    %c0_20 = arith.constant 0 : index
    %c0_21 = arith.constant 0 : index
    %106 = vector.load %arg2[%c0_20, %c0_21] : memref<2x2048xf32, #tpu.memory_space<vmem>>, vector<2x512xf32>
    tpu.vector_store %arg2[%c0_20, %c0_21], %105 {strides = array<i32>} : memref<2x2048xf32, #tpu.memory_space<vmem>>, vector<2x512xf32>,
    %107 = vector.broadcast %77 : f32 to vector<2x512xf32>
    %108 = arith.mulf %43, %107 : vector<2x512xf32>
    %109 = vector.broadcast %79 : f32 to vector<2x512xf32>
    %110 = arith.addf %108, %109 : vector<2x512xf32>
    %c0_22 = arith.constant 0 : index
    %c512_23 = arith.constant 512 : index
    %111 = vector.load %arg2[%c0_22, %c512_23] : memref<2x2048xf32, #tpu.memory_space<vmem>>, vector<2x512xf32>
    tpu.vector_store %arg2[%c0_22, %c512_23], %110 {strides = array<i32>} : memref<2x2048xf32, #tpu.memory_space<vmem>>, vector<2x512xf32>,
    %112 = vector.broadcast %88 : f32 to vector<2x512xf32>
    %113 = arith.mulf %43, %112 : vector<2x512xf32>
    %114 = vector.broadcast %90 : f32 to vector<2x512xf32>
    %115 = arith.addf %113, %114 : vector<2x512xf32>
    %c0_24 = arith.constant 0 : index
    %c1024_25 = arith.constant 1024 : index
    %116 = vector.load %arg2[%c0_24, %c1024_25] : memref<2x2048xf32, #tpu.memory_space<vmem>>, vector<2x512xf32>
    tpu.vector_store %arg2[%c0_24, %c1024_25], %115 {strides = array<i32>} : memref<2x2048xf32, #tpu.memory_space<vmem>>, vector<2x512xf32>,
    %117 = vector.broadcast %99 : f32 to vector<2x512xf32>
    %118 = arith.mulf %43, %117 : vector<2x512xf32>
    %119 = vector.broadcast %101 : f32 to vector<2x512xf32>
    %120 = arith.addf %118, %119 : vector<2x512xf32>
    %c0_26 = arith.constant 0 : index
    %c1536 = arith.constant 1536 : index
    %121 = vector.load %arg2[%c0_26, %c1536] : memref<2x2048xf32, #tpu.memory_space<vmem>>, vector<2x512xf32>
    tpu.vector_store %arg2[%c0_26, %c1536], %120 {strides = array<i32>} : memref<2x2048xf32, #tpu.memory_space<vmem>>, vector<2x512xf32>,
    return
  }
}

</mosaic_0001>

<llo_original>
// kernel: tpu_custom_call.1
$region0: #{tpu_custom_call.1}
  #allocation0 [shape = 'u32[]', space=smem, size = 0x4, offset = 0x4, fixed_abs, tag = 'smem constant byte address 0x4 - core index']
  #allocation1 [shape = 'u32[144,128]{1,0:T(1,128)}', space=vmem, size = 0x12000, scoped, tag = 'internal scratch']
  %s0 = inlined_call_operand.hbm [shape: f32[17], index: 0, kind: input, shape index: {}]
  %s1 = inlined_call_operand.hbm [shape: f32[2,1536], index: 1, kind: input, shape index: {}]
  %s2 = inlined_call_operand.hbm [shape: f32[2,2048], index: 2, kind: output, shape index: {}]
  %s3 = sld [smem:[#allocation0]]
  $region26: #{tpu_custom_call.1} parent=0
    _
  %s5 = ssub.s32 1, %s3
  %s6 = scalar_select 0, %s5, %s3
  $region1: #{tpu_custom_call.1} parent=0
    #allocation2 [shape = 'u8[512]{0}', space=smem, size = 0x200, scoped, tag = 'input window, operand 0, single buffered']
    #allocation3 [shape = 's32[1]{0}', space=sflag, size = 0x4, scoped, tag = 'scoped memory for tpu_custom_call.1']
    #allocation4 [shape = 's32[1]{0}', space=sflag, size = 0x4, scoped, tag = 'scoped memory for tpu_custom_call.1']
    #allocation5 [shape = 's32[1]{0}', space=sflag, size = 0x4, scoped, tag = 'scoped memory for tpu_custom_call.1']
    #allocation6 [shape = 'u8[12288]{0}', space=vmem, size = 0x3000, scoped, tag = 'input window, operand 1, single buffered']
    #allocation7 [shape = 'u8[16384]{0}', space=vmem, size = 0x4000, scoped, tag = 'output window, operand 0, single buffered']
    %7 = vsyncpa [#allocation5], 0
    %8 = vsyncpa [#allocation3], 0
    %9 = vsyncpa [#allocation4], 0
    // Predicated region
    $region2: #{tpu_custom_call.1} parent=1 // pred_check
      _
    $region3: #{tpu_custom_call.1} parent=1 // pred_check_branch
      %11 = sbr.rel (0) target = $region5
    $region4: #{tpu_custom_call.1} parent=1 // pred_region
      %s13 = ssub.s32 16, 16
      %14 = vsyncadd [#allocation5], %s13
      %17 = dma.hbm_to_smem %s0, 16, [#allocation2], [#allocation5]
    $region5: #{tpu_custom_call.1} parent=1 // pred_fallthru
      _
    // Predicated region
    $region6: #{tpu_custom_call.1} parent=1 // pred_check
      _
    $region7: #{tpu_custom_call.1} parent=1 // pred_check_branch
      %19 = sbr.rel (0) target = $region9
    $region8: #{tpu_custom_call.1} parent=1 // pred_region
      %s21 = ssub.s32 384, 384
      %22 = vsyncadd [#allocation3], %s21
      %s24 = sshll.u32 [#allocation6], 4
      %s25 = int_to_ptr.vmem [resolvable:$true] %s24
      %27 = dma.hbm_to_vmem [thread:$0]  %s1, 384, %s25, [#allocation3]
    $region9: #{tpu_custom_call.1} parent=1 // pred_fallthru
      _
    // Predicated region
    $region10: #{tpu_custom_call.1} parent=1 // pred_check
      _
    $region11: #{tpu_custom_call.1} parent=1 // pred_check_branch
      %29 = sbr.rel (0) target = $region13
    $region12: #{tpu_custom_call.1} parent=1 // pred_region
      %30 = dma.done [#allocation5], 16
    $region13: #{tpu_custom_call.1} parent=1 // pred_fallthru
      _
    // Predicated region
    $region14: #{tpu_custom_call.1} parent=1 // pred_check
      _
    $region15: #{tpu_custom_call.1} parent=1 // pred_check_branch
      %32 = sbr.rel (0) target = $region17
    $region16: #{tpu_custom_call.1} parent=1 // pred_region
      %33 = dma.done [#allocation3], 384
    $region17: #{tpu_custom_call.1} parent=1 // pred_fallthru
      _
    %34 = sfence
    %s35 = sld [smem:[#allocation2]]
    %s36 = sld [smem:[#allocation2 + $0x1]]
    %s37 = sld [smem:[#allocation2 + $0x2]]
    %s38 = sld [smem:[#allocation2 + $0x3]]
    %s39 = sld [smem:[#allocation2 + $0x4]]
    %v40 = vld [vmem:[#allocation6] sm:$0xff]
    %v41 = vld [vmem:[#allocation6 + $0x8] sm:$0xff]
    %v42 = vld [vmem:[#allocation6 + $0x10] sm:$0xff]
    %v43 = vstv %s35
    %v44 = vmul.f32 %v43, %v40
    %v45 = vstv %s36
    %v46 = vmul.f32 %v45, %v41
    %v47 = vadd.f32 %v44, %v46
    %v48 = vstv %s37
    %v49 = vmul.f32 %v48, %v42
    %v50 = vadd.f32 %v47, %v49
    %v52 = vcombine.high %v50, %v50
    %v54 = vunpack.c.l.s4 1983009808
    %v55 = vunpack.c.0.s8 %v54
    %v56 = vlaneseq
    %v57 = vshrl.u32 %v56, 7
    %v58 = vsub.s32 %v55, %v57
    %v59 = vrot.slane %v50, %v58
    %v61 = vunpack.c.l.s4 1983009808
    %v62 = vunpack.c.0.s8 %v61
    %v63 = vlaneseq
    %v64 = vshrl.u32 %v63, 7
    %v65 = vsub.s32 %v62, %v64
    %v66 = vrot.slane %v52, %v65
    %v67 = vcombine.high %v59, %v59
    %v68 = vcombine.high %v66, %v66
    %vm73 = vcmask 1041408
    %v74 = vsel %vm73, %v59, 0.0
    %v75 = vsel %vm73, %v67, 0.0
    %v76 = vadd.f32 %v74, %v75
    %v77 = vsel %vm73, %v66, 0.0
    %v78 = vadd.f32 %v76, %v77
    %v79 = vsel %vm73, %v68, 0.0
    %v80 = vadd.f32 %v78, %v79
    %81 = vadd.xlane.f32.xlu0 %v80
    %v82 = vpop.xlane.xlu0 %81
    %v83 = vrot.slane %v82, 4
    %v84 = vadd.f32 %v82, %v83
    %v85 = vrot.slane %v84, 2
    %v86 = vadd.f32 %v84, %v85
    %v87 = vrot.slane %v86, 1
    %v88 = vadd.f32 %v86, %v87
    %s89 = vtos %v88
    %v90 = vmul.f32 %v50, %v50
    %v92 = vcombine.high %v90, %v90
    %v94 = vunpack.c.l.s4 1983009808
    %v95 = vunpack.c.0.s8 %v94
    %v96 = vlaneseq
    %v97 = vshrl.u32 %v96, 7
    %v98 = vsub.s32 %v95, %v97
    %v99 = vrot.slane %v90, %v98
    %v101 = vunpack.c.l.s4 1983009808
    %v102 = vunpack.c.0.s8 %v101
    %v103 = vlaneseq
    %v104 = vshrl.u32 %v103, 7
    %v105 = vsub.s32 %v102, %v104
    %v106 = vrot.slane %v92, %v105
    %v107 = vcombine.high %v99, %v99
    %v108 = vcombine.high %v106, %v106
    %v113 = vsel %vm73, %v99, 0.0
    %v114 = vsel %vm73, %v107, 0.0
    %v115 = vadd.f32 %v113, %v114
    %v116 = vsel %vm73, %v106, 0.0
    %v117 = vadd.f32 %v115, %v116
    %v118 = vsel %vm73, %v108, 0.0
    %v119 = vadd.f32 %v117, %v118
    %120 = vadd.xlane.f32.xlu0 %v119
    %v121 = vpop.xlane.xlu0 %120
    %v122 = vrot.slane %v121, 4
    %v123 = vadd.f32 %v121, %v122
    %v124 = vrot.slane %v123, 2
    %v125 = vadd.f32 %v123, %v124
    %v126 = vrot.slane %v125, 1
    %v127 = vadd.f32 %v125, %v126
    %s128 = vtos %v127
    %s129 = smul.f32 %s89, 0.0009765625
    %s130 = smul.f32 %s128, 0.0009765625
    %s131 = smul.f32 %s129, %s129
    %s132 = ssub.f32 %s130, %s131
    %s133 = smax.f32 %s132, 0.0
    %s134 = sadd.f32 %s133, 1e-05
    %v135 = vstv %s134
    %v136 = vrsqrt.pop %v135
    %s137 = vtos %v136
    %s138 = smul.f32 %s38, %s137
    %s139 = smul.f32 %s138, %s129
    %s140 = ssub.f32 %s39, %s139
    %v141 = vstv %s138
    %v142 = vmul.f32 %v50, %v141
    %v143 = vstv %s140
    %v144 = vadd.f32 %v142, %v143
    %vm145 = vcmp.gt.f32.partialorder %v144, 0.0
    %v146 = vmul.f32 %v144, 0.01164564
    %v147 = vsel %vm145, %v144, %v146
    %v149 = vcombine.high %v147, %v147
    %v151 = vunpack.c.l.s4 1983009808
    %v152 = vunpack.c.0.s8 %v151
    %v153 = vlaneseq
    %v154 = vshrl.u32 %v153, 7
    %v155 = vsub.s32 %v152, %v154
    %v156 = vrot.slane %v147, %v155
    %v158 = vunpack.c.l.s4 1983009808
    %v159 = vunpack.c.0.s8 %v158
    %v160 = vlaneseq
    %v161 = vshrl.u32 %v160, 7
    %v162 = vsub.s32 %v159, %v161
    %v163 = vrot.slane %v149, %v162
    %v164 = vcombine.high %v156, %v156
    %v165 = vcombine.high %v163, %v163
    %v170 = vsel %vm73, %v156, 0.0
    %v171 = vsel %vm73, %v164, 0.0
    %v172 = vadd.f32 %v170, %v171
    %v173 = vsel %vm73, %v163, 0.0
    %v174 = vadd.f32 %v172, %v173
    %v175 = vsel %vm73, %v165, 0.0
    %v176 = vadd.f32 %v174, %v175
    %177 = vadd.xlane.f32.xlu0 %v176
    %v178 = vpop.xlane.xlu0 %177
    %v179 = vrot.slane %v178, 4
    %v180 = vadd.f32 %v178, %v179
    %v181 = vrot.slane %v180, 2
    %v182 = vadd.f32 %v180, %v181
    %v183 = vrot.slane %v182, 1
    %v184 = vadd.f32 %v182, %v183
    %s185 = vtos %v184
    %v186 = vmul.f32 %v147, %v147
    %v188 = vcombine.high %v186, %v186
    %v190 = vunpack.c.l.s4 1983009808
    %v191 = vunpack.c.0.s8 %v190
    %v192 = vlaneseq
    %v193 = vshrl.u32 %v192, 7
    %v194 = vsub.s32 %v191, %v193
    %v195 = vrot.slane %v186, %v194
    %v197 = vunpack.c.l.s4 1983009808
    %v198 = vunpack.c.0.s8 %v197
    %v199 = vlaneseq
    %v200 = vshrl.u32 %v199, 7
    %v201 = vsub.s32 %v198, %v200
    %v202 = vrot.slane %v188, %v201
    %v203 = vcombine.high %v195, %v195
    %v204 = vcombine.high %v202, %v202
    %v209 = vsel %vm73, %v195, 0.0
    %v210 = vsel %vm73, %v203, 0.0
    %v211 = vadd.f32 %v209, %v210
    %v212 = vsel %vm73, %v202, 0.0
    %v213 = vadd.f32 %v211, %v212
    %v214 = vsel %vm73, %v204, 0.0
    %v215 = vadd.f32 %v213, %v214
    %216 = vadd.xlane.f32.xlu0 %v215
    %v217 = vpop.xlane.xlu0 %216
    %v218 = vrot.slane %v217, 4
    %v219 = vadd.f32 %v217, %v218
    %v220 = vrot.slane %v219, 2
    %v221 = vadd.f32 %v219, %v220
    %v222 = vrot.slane %v221, 1
    %v223 = vadd.f32 %v221, %v222
    %s224 = vtos %v223
    %s225 = smul.f32 %s185, 0.0009765625
    %s226 = smul.f32 %s224, 0.0009765625
    %s227 = smul.f32 %s225, %s225
    %s228 = ssub.f32 %s226, %s227
    %s229 = smax.f32 %s228, 0.0
    %s230 = sld [smem:[#allocation2 + $0x5]]
    %s231 = sld [smem:[#allocation2 + $0x9]]
    %s232 = sld [smem:[#allocation2 + $0xd]]
    %s233 = smul.f32 %s231, %s230
    %s234 = smul.f32 %s230, %s230
    %s235 = smul.f32 %s234, %s229
    %s236 = sadd.f32 %s235, 1e-05
    %v237 = vstv %s236
    %v238 = vrsqrt.pop %v237
    %s239 = vtos %v238
    %s240 = smul.f32 %s233, %s239
    %s241 = smul.f32 %s240, %s225
    %s242 = ssub.f32 %s232, %s241
    %s243 = sld [smem:[#allocation2 + $0x6]]
    %s244 = sld [smem:[#allocation2 + $0xa]]
    %s245 = sld [smem:[#allocation2 + $0xe]]
    %s246 = smul.f32 %s244, %s243
    %s247 = smul.f32 %s243, %s243
    %s248 = smul.f32 %s247, %s229
    %s249 = sadd.f32 %s248, 1e-05
    %v250 = vstv %s249
    %v251 = vrsqrt.pop %v250
    %s252 = vtos %v251
    %s253 = smul.f32 %s246, %s252
    %s254 = smul.f32 %s253, %s225
    %s255 = ssub.f32 %s245, %s254
    %s256 = sld [smem:[#allocation2 + $0x7]]
    %s257 = sld [smem:[#allocation2 + $0xb]]
    %s258 = sld [smem:[#allocation2 + $0xf]]
    %s259 = smul.f32 %s257, %s256
    %s260 = smul.f32 %s256, %s256
    %s261 = smul.f32 %s260, %s229
    %s262 = sadd.f32 %s261, 1e-05
    %v263 = vstv %s262
    %v264 = vrsqrt.pop %v263
    %s265 = vtos %v264
    %s266 = smul.f32 %s259, %s265
    %s267 = smul.f32 %s266, %s225
    %s268 = ssub.f32 %s258, %s267
    %s269 = sld [smem:[#allocation2 + $0x8]]
    %s270 = sld [smem:[#allocation2 + $0xc]]
    %s271 = sld [smem:[#allocation2 + $0x10]]
    %s272 = smul.f32 %s270, %s269
    %s273 = smul.f32 %s269, %s269
    %s274 = smul.f32 %s273, %s229
    %s275 = sadd.f32 %s274, 1e-05
    %v276 = vstv %s275
    %v277 = vrsqrt.pop %v276
    %s278 = vtos %v277
    %s279 = smul.f32 %s272, %s278
    %s280 = smul.f32 %s279, %s225
    %s281 = ssub.f32 %s271, %s280
    %v282 = vstv %s240
    %v283 = vmul.f32 %v147, %v282
    %v284 = vstv %s242
    %v285 = vadd.f32 %v283, %v284
    %286 = vst [vmem:[#allocation7] sm:$0xff] %v285
    %v287 = vstv %s253
    %v288 = vmul.f32 %v147, %v287
    %v289 = vstv %s255
    %v290 = vadd.f32 %v288, %v289
    %291 = vst [vmem:[#allocation7 + $0x8] sm:$0xff] %v290
    %v292 = vstv %s266
    %v293 = vmul.f32 %v147, %v292
    %v294 = vstv %s268
    %v295 = vadd.f32 %v293, %v294
    %296 = vst [vmem:[#allocation7 + $0x10] sm:$0xff] %v295
    %v297 = vstv %s279
    %v298 = vmul.f32 %v147, %v297
    %v299 = vstv %s281
    %v300 = vadd.f32 %v298, %v299
    %301 = vst [vmem:[#allocation7 + $0x18] sm:$0xff] %v300
    // Predicated region
    $region18: #{tpu_custom_call.1} parent=1 // pred_check
      _
    $region19: #{tpu_custom_call.1} parent=1 // pred_check_branch
      %303 = sbr.rel (0) target = $region21
    $region20: #{tpu_custom_call.1} parent=1 // pred_region
      %s305 = ssub.s32 512, 512
      %306 = vsyncadd [#allocation4], %s305
      %s308 = sshll.u32 [#allocation7], 4
      %s309 = int_to_ptr.vmem [resolvable:$true] %s308
      %311 = dma.vmem_to_hbm [thread:$0]  %s309, 512, %s2, [#allocation4]
    $region21: #{tpu_custom_call.1} parent=1 // pred_fallthru
      _
    // Predicated region
    $region22: #{tpu_custom_call.1} parent=1 // pred_check
      _
    $region23: #{tpu_custom_call.1} parent=1 // pred_check_branch
      %313 = sbr.rel (0) target = $region25
    $region24: #{tpu_custom_call.1} parent=1 // pred_region
      %314 = dma.done [#allocation4], 512
    $region25: #{tpu_custom_call.1} parent=1 // pred_fallthru
      _
    %315 = vsyncpa [#allocation3], 1
    %316 = vsyncpa [#allocation4], 1
    %317 = vsyncpa [#allocation5], 1

</llo_original>
